<compile_context>
chip_gen: v7x
topology: tpu7x:2x2x1
jax: 0.10.0
libtpu: 0.0.40
codegen_flags: <defaults>
</compile_context>

<pallas_src>
import jax
import jax.numpy as jnp
from jax.experimental import pallas as pl
from jax.experimental.pallas import tpu as pltpu

IN_FEATURES = 2
HIDDEN = 6
OUT_FEATURES = 1


def mlp_kernel(x_ref, w1_ref, b1_ref, w2_ref, b2_ref, o_ref):
    # x_ref: (IN_FEATURES, TB) f32, batch on lanes.
    # w1_ref: (IN_FEATURES*HIDDEN,) f32 in SMEM, row-major (in, hidden).
    # b1_ref: (HIDDEN,), w2_ref: (HIDDEN,), b2_ref: (1,) f32 in SMEM.
    xv = x_ref[...]                       # (2, TB) single dense load
    x0 = xv[0:1, :]                       # (1, TB)
    x1 = xv[1:2, :]                       # (1, TB)
    z = jnp.full_like(x0, b2_ref[0])      # start from output bias
    # Statically unrolled over the 6 hidden units: pure VPU multiply-adds,
    # weights are SMEM scalar broadcasts. No MXU involvement.
    for j in range(HIDDEN):
        h = x0 * w1_ref[j] + x1 * w1_ref[HIDDEN + j] + b1_ref[j]
        h = jnp.maximum(h, 0.0)           # ReLU (VPU)
        z = z + h * w2_ref[j]
    o_ref[...] = jax.nn.sigmoid(z)        # EUP; lane-dense (1, TB) store


def neural_network_forward(x, w1, b1, w2, b2, *, block_b=2048):
    """x: (B, 2) f32. w1: (2, 6), b1: (1, 6), w2: (6, 1), b2: (1, 1)."""
    B, F = x.shape
    assert F == IN_FEATURES

    # Lane-dense batch tile: multiple of 128, capped at block_b.
    TB = min(block_b, pl.cdiv(B, 128) * 128)
    Bp = pl.cdiv(B, TB) * TB              # pad batch to a whole number of tiles

    # Wrapper-side layout plumbing: batch onto the lane axis, pad with zeros.
    xt = jnp.pad(x.T.astype(jnp.float32), ((0, 0), (0, Bp - B)))   # (2, Bp)

    # Flatten params for SMEM residence (1-D avoids (8,128) SMEM padding blowup).
    w1f = w1.reshape(-1).astype(jnp.float32)   # (12,)
    b1f = b1.reshape(-1).astype(jnp.float32)   # (6,)
    w2f = w2.reshape(-1).astype(jnp.float32)   # (6,)
    b2f = b2.reshape(-1).astype(jnp.float32)   # (1,)

    out_t = pl.pallas_call(
        mlp_kernel,
        out_shape=jax.ShapeDtypeStruct((1, Bp), jnp.float32),
        grid_spec=pltpu.PrefetchScalarGridSpec(
            num_scalar_prefetch=0,
            grid=(Bp // TB,),
            in_specs=[
                pl.BlockSpec((IN_FEATURES, TB), lambda i: (0, i)),
                pl.BlockSpec(memory_space=pltpu.MemorySpace.SMEM),
                pl.BlockSpec(memory_space=pltpu.MemorySpace.SMEM),
                pl.BlockSpec(memory_space=pltpu.MemorySpace.SMEM),
                pl.BlockSpec(memory_space=pltpu.MemorySpace.SMEM),
            ],
            out_specs=pl.BlockSpec((1, TB), lambda i: (0, i)),
        ),
        compiler_params=pltpu.CompilerParams(
            dimension_semantics=("parallel",)),   # megacore sharding on v7x
    )(xt, w1f, b1f, w2f, b2f)

    return out_t[:, :B].T                 # (B, 1), PyTorch convention


def init_params(key):
    # Deterministic init mimicking PyTorch's U(-1/sqrt(fan_in), 1/sqrt(fan_in)).
    k1, k2, k3, k4 = jax.random.split(key, 4)
    bound1 = 1.0 / jnp.sqrt(2.0)
    bound2 = 1.0 / jnp.sqrt(6.0)
    w1 = jax.random.uniform(k1, (2, 6), jnp.float32, -bound1, bound1)
    b1 = jax.random.uniform(k2, (1, 6), jnp.float32, -bound1, bound1)
    w2 = jax.random.uniform(k3, (6, 1), jnp.float32, -bound2, bound2)
    b2 = jax.random.uniform(k4, (1, 1), jnp.float32, -bound2, bound2)
    return w1, b1, w2, b2


if __name__ == "__main__":
    key = jax.random.PRNGKey(0)
    kx, kp = jax.random.split(key)
    B = 8
    x = jax.random.normal(kx, (B, 2), jnp.float32)
    w1, b1, w2, b2 = init_params(kp)

    out = neural_network_forward(x, w1, b1, w2, b2)
    jax.block_until_ready(out)

    # Pure-JAX reference check (matches the PyTorch forward semantics).
    ref = jax.nn.sigmoid(jnp.maximum(x @ w1 + b1, 0.0) @ w2 + b2)
    assert out.shape == (B, 1)
    assert jnp.allclose(out, ref, atol=1e-5), "mismatch vs reference"
    print("KERNEL_OK")
</pallas_src>

<mosaic_0001>
module attributes {stable_mosaic.version = 11 : i64} {
  func.func @mlp_kernel(%arg0: i32, %arg1: memref<2x128xf32, #tpu.memory_space<vmem>>, %arg2: memref<12xf32, #tpu.memory_space<smem>>, %arg3: memref<6xf32, #tpu.memory_space<smem>>, %arg4: memref<6xf32, #tpu.memory_space<smem>>, %arg5: memref<1xf32, #tpu.memory_space<smem>>, %arg6: memref<1x128xf32, #tpu.memory_space<vmem>>) attributes {dimension_semantics = [#tpu.dimension_semantics<parallel>], iteration_bounds = array<i64: 1>, scalar_prefetch = 0 : i64, scratch_operands = 0 : i64, tpu.core_type = #tpu.core_type<tc>, window_params = [{transform_indices = @transform_0, window_bounds = array<i64: 2, 128>}, {transform_indices = @transform_1, window_bounds = array<i64: 12>}, {transform_indices = @transform_2, window_bounds = array<i64: 6>}, {transform_indices = @transform_3, window_bounds = array<i64: 6>}, {transform_indices = @transform_4, window_bounds = array<i64: 1>}, {transform_indices = @transform_5, window_bounds = array<i64: 1, 128>}]} {
    %c0 = arith.constant 0 : index
    %c0_0 = arith.constant 0 : index
    %0 = vector.load %arg1[%c0, %c0_0] : memref<2x128xf32, #tpu.memory_space<vmem>>, vector<2x128xf32>
    %1 = vector.extract_strided_slice %0 {offsets = [0, 0], sizes = [1, 128], strides = [1, 1]} : vector<2x128xf32> to vector<1x128xf32>
    %2 = vector.extract_strided_slice %0 {offsets = [1, 0], sizes = [1, 128], strides = [1, 1]} : vector<2x128xf32> to vector<1x128xf32>
    %c0_1 = arith.constant 0 : index
    %3 = memref.load %arg5[%c0_1] : memref<1xf32, #tpu.memory_space<smem>>
    %4 = vector.broadcast %3 : f32 to vector<1x128xf32>
    %c0_2 = arith.constant 0 : index
    %5 = memref.load %arg2[%c0_2] : memref<12xf32, #tpu.memory_space<smem>>
    %6 = vector.broadcast %5 : f32 to vector<1x128xf32>
    %7 = arith.mulf %1, %6 : vector<1x128xf32>
    %c6 = arith.constant 6 : index
    %8 = memref.load %arg2[%c6] : memref<12xf32, #tpu.memory_space<smem>>
    %9 = vector.broadcast %8 : f32 to vector<1x128xf32>
    %10 = arith.mulf %2, %9 : vector<1x128xf32>
    %11 = arith.addf %7, %10 : vector<1x128xf32>
    %c0_3 = arith.constant 0 : index
    %12 = memref.load %arg3[%c0_3] : memref<6xf32, #tpu.memory_space<smem>>
    %13 = vector.broadcast %12 : f32 to vector<1x128xf32>
    %14 = arith.addf %11, %13 : vector<1x128xf32>
    %cst = arith.constant 0.000000e+00 : f32
    %15 = vector.broadcast %cst : f32 to vector<1x128xf32>
    %16 = arith.maximumf %14, %15 : vector<1x128xf32>
    %c0_4 = arith.constant 0 : index
    %17 = memref.load %arg4[%c0_4] : memref<6xf32, #tpu.memory_space<smem>>
    %18 = vector.broadcast %17 : f32 to vector<1x128xf32>
    %19 = arith.mulf %16, %18 : vector<1x128xf32>
    %20 = arith.addf %4, %19 : vector<1x128xf32>
    %c1 = arith.constant 1 : index
    %21 = memref.load %arg2[%c1] : memref<12xf32, #tpu.memory_space<smem>>
    %22 = vector.broadcast %21 : f32 to vector<1x128xf32>
    %23 = arith.mulf %1, %22 : vector<1x128xf32>
    %c7 = arith.constant 7 : index
    %24 = memref.load %arg2[%c7] : memref<12xf32, #tpu.memory_space<smem>>
    %25 = vector.broadcast %24 : f32 to vector<1x128xf32>
    %26 = arith.mulf %2, %25 : vector<1x128xf32>
    %27 = arith.addf %23, %26 : vector<1x128xf32>
    %c1_5 = arith.constant 1 : index
    %28 = memref.load %arg3[%c1_5] : memref<6xf32, #tpu.memory_space<smem>>
    %29 = vector.broadcast %28 : f32 to vector<1x128xf32>
    %30 = arith.addf %27, %29 : vector<1x128xf32>
    %cst_6 = arith.constant 0.000000e+00 : f32
    %31 = vector.broadcast %cst_6 : f32 to vector<1x128xf32>
    %32 = arith.maximumf %30, %31 : vector<1x128xf32>
    %c1_7 = arith.constant 1 : index
    %33 = memref.load %arg4[%c1_7] : memref<6xf32, #tpu.memory_space<smem>>
    %34 = vector.broadcast %33 : f32 to vector<1x128xf32>
    %35 = arith.mulf %32, %34 : vector<1x128xf32>
    %36 = arith.addf %20, %35 : vector<1x128xf32>
    %c2 = arith.constant 2 : index
    %37 = memref.load %arg2[%c2] : memref<12xf32, #tpu.memory_space<smem>>
    %38 = vector.broadcast %37 : f32 to vector<1x128xf32>
    %39 = arith.mulf %1, %38 : vector<1x128xf32>
    %c8 = arith.constant 8 : index
    %40 = memref.load %arg2[%c8] : memref<12xf32, #tpu.memory_space<smem>>
    %41 = vector.broadcast %40 : f32 to vector<1x128xf32>
    %42 = arith.mulf %2, %41 : vector<1x128xf32>
    %43 = arith.addf %39, %42 : vector<1x128xf32>
    %c2_8 = arith.constant 2 : index
    %44 = memref.load %arg3[%c2_8] : memref<6xf32, #tpu.memory_space<smem>>
    %45 = vector.broadcast %44 : f32 to vector<1x128xf32>
    %46 = arith.addf %43, %45 : vector<1x128xf32>
    %cst_9 = arith.constant 0.000000e+00 : f32
    %47 = vector.broadcast %cst_9 : f32 to vector<1x128xf32>
    %48 = arith.maximumf %46, %47 : vector<1x128xf32>
    %c2_10 = arith.constant 2 : index
    %49 = memref.load %arg4[%c2_10] : memref<6xf32, #tpu.memory_space<smem>>
    %50 = vector.broadcast %49 : f32 to vector<1x128xf32>
    %51 = arith.mulf %48, %50 : vector<1x128xf32>
    %52 = arith.addf %36, %51 : vector<1x128xf32>
    %c3 = arith.constant 3 : index
    %53 = memref.load %arg2[%c3] : memref<12xf32, #tpu.memory_space<smem>>
    %54 = vector.broadcast %53 : f32 to vector<1x128xf32>
    %55 = arith.mulf %1, %54 : vector<1x128xf32>
    %c9 = arith.constant 9 : index
    %56 = memref.load %arg2[%c9] : memref<12xf32, #tpu.memory_space<smem>>
    %57 = vector.broadcast %56 : f32 to vector<1x128xf32>
    %58 = arith.mulf %2, %57 : vector<1x128xf32>
    %59 = arith.addf %55, %58 : vector<1x128xf32>
    %c3_11 = arith.constant 3 : index
    %60 = memref.load %arg3[%c3_11] : memref<6xf32, #tpu.memory_space<smem>>
    %61 = vector.broadcast %60 : f32 to vector<1x128xf32>
    %62 = arith.addf %59, %61 : vector<1x128xf32>
    %cst_12 = arith.constant 0.000000e+00 : f32
    %63 = vector.broadcast %cst_12 : f32 to vector<1x128xf32>
    %64 = arith.maximumf %62, %63 : vector<1x128xf32>
    %c3_13 = arith.constant 3 : index
    %65 = memref.load %arg4[%c3_13] : memref<6xf32, #tpu.memory_space<smem>>
    %66 = vector.broadcast %65 : f32 to vector<1x128xf32>
    %67 = arith.mulf %64, %66 : vector<1x128xf32>
    %68 = arith.addf %52, %67 : vector<1x128xf32>
    %c4 = arith.constant 4 : index
    %69 = memref.load %arg2[%c4] : memref<12xf32, #tpu.memory_space<smem>>
    %70 = vector.broadcast %69 : f32 to vector<1x128xf32>
    %71 = arith.mulf %1, %70 : vector<1x128xf32>
    %c10 = arith.constant 10 : index
    %72 = memref.load %arg2[%c10] : memref<12xf32, #tpu.memory_space<smem>>
    %73 = vector.broadcast %72 : f32 to vector<1x128xf32>
    %74 = arith.mulf %2, %73 : vector<1x128xf32>
    %75 = arith.addf %71, %74 : vector<1x128xf32>
    %c4_14 = arith.constant 4 : index
    %76 = memref.load %arg3[%c4_14] : memref<6xf32, #tpu.memory_space<smem>>
    %77 = vector.broadcast %76 : f32 to vector<1x128xf32>
    %78 = arith.addf %75, %77 : vector<1x128xf32>
    %cst_15 = arith.constant 0.000000e+00 : f32
    %79 = vector.broadcast %cst_15 : f32 to vector<1x128xf32>
    %80 = arith.maximumf %78, %79 : vector<1x128xf32>
    %c4_16 = arith.constant 4 : index
    %81 = memref.load %arg4[%c4_16] : memref<6xf32, #tpu.memory_space<smem>>
    %82 = vector.broadcast %81 : f32 to vector<1x128xf32>
    %83 = arith.mulf %80, %82 : vector<1x128xf32>
    %84 = arith.addf %68, %83 : vector<1x128xf32>
    %c5 = arith.constant 5 : index
    %85 = memref.load %arg2[%c5] : memref<12xf32, #tpu.memory_space<smem>>
    %86 = vector.broadcast %85 : f32 to vector<1x128xf32>
    %87 = arith.mulf %1, %86 : vector<1x128xf32>
    %c11 = arith.constant 11 : index
    %88 = memref.load %arg2[%c11] : memref<12xf32, #tpu.memory_space<smem>>
    %89 = vector.broadcast %88 : f32 to vector<1x128xf32>
    %90 = arith.mulf %2, %89 : vector<1x128xf32>
    %91 = arith.addf %87, %90 : vector<1x128xf32>
    %c5_17 = arith.constant 5 : index
    %92 = memref.load %arg3[%c5_17] : memref<6xf32, #tpu.memory_space<smem>>
    %93 = vector.broadcast %92 : f32 to vector<1x128xf32>
    %94 = arith.addf %91, %93 : vector<1x128xf32>
    %cst_18 = arith.constant 0.000000e+00 : f32
    %95 = vector.broadcast %cst_18 : f32 to vector<1x128xf32>
    %96 = arith.maximumf %94, %95 : vector<1x128xf32>
    %c5_19 = arith.constant 5 : index
    %97 = memref.load %arg4[%c5_19] : memref<6xf32, #tpu.memory_space<smem>>
    %98 = vector.broadcast %97 : f32 to vector<1x128xf32>
    %99 = arith.mulf %96, %98 : vector<1x128xf32>
    %100 = arith.addf %84, %99 : vector<1x128xf32>
    %101 = arith.negf %100 : vector<1x128xf32>
    %102 = math.exp %101 : vector<1x128xf32>
    %cst_20 = arith.constant 1.000000e+00 : f32
    %103 = vector.broadcast %cst_20 : f32 to vector<1x128xf32>
    %104 = arith.addf %103, %102 : vector<1x128xf32>
    %105 = arith.divf %103, %104 : vector<1x128xf32>
    %c0_21 = arith.constant 0 : index
    %c0_22 = arith.constant 0 : index
    %106 = vector.load %arg6[%c0_21, %c0_22] : memref<1x128xf32, #tpu.memory_space<vmem>>, vector<1x128xf32>
    tpu.vector_store %arg6[%c0_21, %c0_22], %105 {strides = array<i32>} : memref<1x128xf32, #tpu.memory_space<vmem>>, vector<1x128xf32>,
    return
  }
  func.func @transform_0(%arg0: i32) -> (i32, i32) {
    %c0_i32 = arith.constant 0 : i32
    %c0_i32_0 = arith.constant 0 : i32
    return %c0_i32, %arg0 : i32, i32
  }
  func.func @transform_1(%arg0: i32) -> i32 {
    %c0_i32 = arith.constant 0 : i32
    %c0_i32_0 = arith.constant 0 : i32
    return %c0_i32 : i32
  }
  func.func @transform_2(%arg0: i32) -> i32 {
    %c0_i32 = arith.constant 0 : i32
    %c0_i32_0 = arith.constant 0 : i32
    return %c0_i32 : i32
  }
  func.func @transform_3(%arg0: i32) -> i32 {
    %c0_i32 = arith.constant 0 : i32
    %c0_i32_0 = arith.constant 0 : i32
    return %c0_i32 : i32
  }
  func.func @transform_4(%arg0: i32) -> i32 {
    %c0_i32 = arith.constant 0 : i32
    %c0_i32_0 = arith.constant 0 : i32
    return %c0_i32 : i32
  }
  func.func @transform_5(%arg0: i32) -> (i32, i32) {
    %c0_i32 = arith.constant 0 : i32
    %c0_i32_0 = arith.constant 0 : i32
    return %c0_i32, %arg0 : i32, i32
  }
}

</mosaic_0001>

<llo_original>
// kernel: tpu_custom_call.1
$region0: #{tpu_custom_call.1}
  #allocation0 [shape = 'u32[]', space=smem, size = 0x4, offset = 0x4, fixed_abs, tag = 'smem constant byte address 0x4 - core index']
  #allocation1 [shape = 'u32[144,128]{1,0:T(1,128)}', space=vmem, size = 0x12000, scoped, tag = 'internal scratch']
  #allocation2 [shape = 'f32[1]{0:T(128)S(6)}', space=smem, size = 0x200, scoped, tag = 'scoped memory for tpu_custom_call.1']
  %s0 = inlined_call_operand.vmem [shape: f32[2,128], index: 0, kind: input, shape index: {}]
  %s1 = inlined_call_operand.vmem [shape: f32[12], index: 1, kind: input, shape index: {}]
  %s2 = inlined_call_operand.vmem [shape: f32[6], index: 2, kind: input, shape index: {}]
  %s3 = inlined_call_operand.vmem [shape: f32[6], index: 3, kind: input, shape index: {}]
  %s4 = inlined_call_operand.<no memory space> [shape: f32[1], index: 4, kind: input, shape index: {}]
  %s5 = inlined_call_operand.hbm [shape: f32[1,128], index: 5, kind: output, shape index: {}]
  %s6 = sld [smem:[#allocation0]]
  $region42: #{tpu_custom_call.1} parent=0
    _
  %s8 = ssub.s32 1, %s6
  %s9 = scalar_select 0, %s8, %s6
  %10 = sst [smem:[#allocation2]] %s4
  $region1: #{tpu_custom_call.1} parent=0
    #allocation3 [shape = 'u8[512]{0}', space=smem, size = 0x200, scoped, tag = 'input window, operand 1, single buffered']
    #allocation4 [shape = 's32[1]{0}', space=sflag, size = 0x4, scoped, tag = 'scoped memory for tpu_custom_call.1']
    #allocation5 [shape = 's32[1]{0}', space=sflag, size = 0x4, scoped, tag = 'scoped memory for tpu_custom_call.1']
    #allocation6 [shape = 'u8[512]{0}', space=smem, size = 0x200, scoped, tag = 'input window, operand 2, single buffered']
    #allocation7 [shape = 's32[1]{0}', space=sflag, size = 0x4, scoped, tag = 'scoped memory for tpu_custom_call.1']
    #allocation8 [shape = 'u8[512]{0}', space=smem, size = 0x200, scoped, tag = 'input window, operand 3, single buffered']
    #allocation9 [shape = 'u8[512]{0}', space=vmem, size = 0x400, scoped, tag = 'output window, operand 0, single buffered']
    %11 = vsyncpa [#allocation5], 0
    %12 = vsyncpa [#allocation7], 0
    %13 = vsyncpa [#allocation4], 0
    // Predicated region
    $region2: #{tpu_custom_call.1} parent=1 // pred_check
      _
    $region3: #{tpu_custom_call.1} parent=1 // pred_check_branch
      %15 = sbr.rel (0) target = $region5
    $region4: #{tpu_custom_call.1} parent=1 // pred_region
      _
    $region5: #{tpu_custom_call.1} parent=1 // pred_fallthru
      _
    // Predicated region
    $region6: #{tpu_custom_call.1} parent=1 // pred_check
      _
    $region7: #{tpu_custom_call.1} parent=1 // pred_check_branch
      %17 = sbr.rel (0) target = $region9
    $region8: #{tpu_custom_call.1} parent=1 // pred_region
      %s19 = ssub.s32 16, 16
      %20 = vsyncadd [#allocation5], %s19
      %s22 = sshll.u32 %s1, 4
      %s23 = int_to_ptr.vmem [resolvable:$true] %s22
      %25 = dma.vmem_to_smem %s23, 16, [#allocation3], [#allocation5]
    $region9: #{tpu_custom_call.1} parent=1 // pred_fallthru
      _
    // Predicated region
    $region10: #{tpu_custom_call.1} parent=1 // pred_check
      _
    $region11: #{tpu_custom_call.1} parent=1 // pred_check_branch
      %27 = sbr.rel (0) target = $region13
    $region12: #{tpu_custom_call.1} parent=1 // pred_region
      %s29 = ssub.s32 16, 16
      %30 = vsyncadd [#allocation7], %s29
      %s32 = sshll.u32 %s2, 4
      %s33 = int_to_ptr.vmem [resolvable:$true] %s32
      %35 = dma.vmem_to_smem %s33, 16, [#allocation6], [#allocation7]
    $region13: #{tpu_custom_call.1} parent=1 // pred_fallthru
      _
    // Predicated region
    $region14: #{tpu_custom_call.1} parent=1 // pred_check
      _
    $region15: #{tpu_custom_call.1} parent=1 // pred_check_branch
      %37 = sbr.rel (0) target = $region17
    $region16: #{tpu_custom_call.1} parent=1 // pred_region
      %s39 = ssub.s32 16, 16
      %40 = vsyncadd [#allocation7], %s39
      %s42 = sshll.u32 %s3, 4
      %s43 = int_to_ptr.vmem [resolvable:$true] %s42
      %45 = dma.vmem_to_smem %s43, 16, [#allocation8], [#allocation7]
    $region17: #{tpu_custom_call.1} parent=1 // pred_fallthru
      _
    // Predicated region
    $region18: #{tpu_custom_call.1} parent=1 // pred_check
      _
    $region19: #{tpu_custom_call.1} parent=1 // pred_check_branch
      %47 = sbr.rel (0) target = $region21
    $region20: #{tpu_custom_call.1} parent=1 // pred_region
      _
    $region21: #{tpu_custom_call.1} parent=1 // pred_fallthru
      _
    // Predicated region
    $region22: #{tpu_custom_call.1} parent=1 // pred_check
      _
    $region23: #{tpu_custom_call.1} parent=1 // pred_check_branch
      %49 = sbr.rel (0) target = $region25
    $region24: #{tpu_custom_call.1} parent=1 // pred_region
      %50 = dma.done [#allocation5], 16
    $region25: #{tpu_custom_call.1} parent=1 // pred_fallthru
      _
    // Predicated region
    $region26: #{tpu_custom_call.1} parent=1 // pred_check
      _
    $region27: #{tpu_custom_call.1} parent=1 // pred_check_branch
      %52 = sbr.rel (0) target = $region29
    $region28: #{tpu_custom_call.1} parent=1 // pred_region
      %53 = dma.done [#allocation7], 16
    $region29: #{tpu_custom_call.1} parent=1 // pred_fallthru
      _
    // Predicated region
    $region30: #{tpu_custom_call.1} parent=1 // pred_check
      _
    $region31: #{tpu_custom_call.1} parent=1 // pred_check_branch
      %55 = sbr.rel (0) target = $region33
    $region32: #{tpu_custom_call.1} parent=1 // pred_region
      %56 = dma.done [#allocation7], 16
    $region33: #{tpu_custom_call.1} parent=1 // pred_fallthru
      _
    %57 = sfence
    %v58 = vld [vmem:[%s0] sm:$0x3]
    %s59 = sld [smem:[#allocation2]]
    %v60 = vstv %s59
    %s61 = sld [smem:[#allocation3]]
    %v62 = vstv %s61
    %v63 = vmul.f32 %v58, %v62
    %s64 = sld [smem:[#allocation3 + $0x6]]
    %v65 = vstv %s64
    %v66 = vmul.f32 %v58, %v65
    %v68 = vrot.slane %v66, 1
    %v70 = vadd.f32 %v63, %v68
    %s71 = sld [smem:[#allocation6]]
    %v72 = vstv %s71
    %v73 = vadd.f32 %v70, %v72
    %v74 = vmax.f32 %v73, 0.0
    %s75 = sld [smem:[#allocation8]]
    %v76 = vstv %s75
    %v77 = vmul.f32 %v74, %v76
    %v78 = vadd.f32 %v60, %v77
    %s79 = sld [smem:[#allocation3 + $0x1]]
    %v80 = vstv %s79
    %v81 = vmul.f32 %v58, %v80
    %s82 = sld [smem:[#allocation3 + $0x7]]
    %v83 = vstv %s82
    %v84 = vmul.f32 %v58, %v83
    %v86 = vrot.slane %v84, 1
    %v88 = vadd.f32 %v81, %v86
    %s89 = sld [smem:[#allocation6 + $0x1]]
    %v90 = vstv %s89
    %v91 = vadd.f32 %v88, %v90
    %v92 = vmax.f32 %v91, 0.0
    %s93 = sld [smem:[#allocation8 + $0x1]]
    %v94 = vstv %s93
    %v95 = vmul.f32 %v92, %v94
    %v96 = vadd.f32 %v78, %v95
    %s97 = sld [smem:[#allocation3 + $0x2]]
    %v98 = vstv %s97
    %v99 = vmul.f32 %v58, %v98
    %s100 = sld [smem:[#allocation3 + $0x8]]
    %v101 = vstv %s100
    %v102 = vmul.f32 %v58, %v101
    %v104 = vrot.slane %v102, 1
    %v106 = vadd.f32 %v99, %v104
    %s107 = sld [smem:[#allocation6 + $0x2]]
    %v108 = vstv %s107
    %v109 = vadd.f32 %v106, %v108
    %v110 = vmax.f32 %v109, 0.0
    %s111 = sld [smem:[#allocation8 + $0x2]]
    %v112 = vstv %s111
    %v113 = vmul.f32 %v110, %v112
    %v114 = vadd.f32 %v96, %v113
    %s115 = sld [smem:[#allocation3 + $0x3]]
    %v116 = vstv %s115
    %v117 = vmul.f32 %v58, %v116
    %s118 = sld [smem:[#allocation3 + $0x9]]
    %v119 = vstv %s118
    %v120 = vmul.f32 %v58, %v119
    %v122 = vrot.slane %v120, 1
    %v124 = vadd.f32 %v117, %v122
    %s125 = sld [smem:[#allocation6 + $0x3]]
    %v126 = vstv %s125
    %v127 = vadd.f32 %v124, %v126
    %v128 = vmax.f32 %v127, 0.0
    %s129 = sld [smem:[#allocation8 + $0x3]]
    %v130 = vstv %s129
    %v131 = vmul.f32 %v128, %v130
    %v132 = vadd.f32 %v114, %v131
    %s133 = sld [smem:[#allocation3 + $0x4]]
    %v134 = vstv %s133
    %v135 = vmul.f32 %v58, %v134
    %s136 = sld [smem:[#allocation3 + $0xa]]
    %v137 = vstv %s136
    %v138 = vmul.f32 %v58, %v137
    %v140 = vrot.slane %v138, 1
    %v142 = vadd.f32 %v135, %v140
    %s143 = sld [smem:[#allocation6 + $0x4]]
    %v144 = vstv %s143
    %v145 = vadd.f32 %v142, %v144
    %v146 = vmax.f32 %v145, 0.0
    %s147 = sld [smem:[#allocation8 + $0x4]]
    %v148 = vstv %s147
    %v149 = vmul.f32 %v146, %v148
    %v150 = vadd.f32 %v132, %v149
    %s151 = sld [smem:[#allocation3 + $0x5]]
    %v152 = vstv %s151
    %v153 = vmul.f32 %v58, %v152
    %s154 = sld [smem:[#allocation3 + $0xb]]
    %v155 = vstv %s154
    %v156 = vmul.f32 %v58, %v155
    %v158 = vrot.slane %v156, 1
    %v160 = vadd.f32 %v153, %v158
    %s161 = sld [smem:[#allocation6 + $0x5]]
    %v162 = vstv %s161
    %v163 = vadd.f32 %v160, %v162
    %v164 = vmax.f32 %v163, 0.0
    %s165 = sld [smem:[#allocation8 + $0x5]]
    %v166 = vstv %s165
    %v167 = vmul.f32 %v164, %v166
    %v168 = vadd.f32 %v150, %v167
    %v169 = vxor.u32 %v168, 2147483648
    %v170 = vmul.f32 %v169, 1.442695
    %v171 = vpow.pop %v170
    %v172 = vadd.f32 %v171, 1.0
    %v173 = vrcp.pop %v172
    %v174 = vmul.f32 1.0, %v173
    %175 = vst [vmem:[#allocation9] sm:$0x1] %v174
    // Predicated region
    $region34: #{tpu_custom_call.1} parent=1 // pred_check
      _
    $region35: #{tpu_custom_call.1} parent=1 // pred_check_branch
      %177 = sbr.rel (0) target = $region37
    $region36: #{tpu_custom_call.1} parent=1 // pred_region
      %s179 = ssub.s32 16, 16
      %180 = vsyncadd [#allocation4], %s179
      %s182 = sshll.u32 [#allocation9], 4
      %s183 = int_to_ptr.vmem [resolvable:$true] %s182
      %185 = dma.vmem_to_hbm [thread:$0]  %s183, 16, %s5, [#allocation4]
    $region37: #{tpu_custom_call.1} parent=1 // pred_fallthru
      _
    // Predicated region
    $region38: #{tpu_custom_call.1} parent=1 // pred_check
      _
    $region39: #{tpu_custom_call.1} parent=1 // pred_check_branch
      %187 = sbr.rel (0) target = $region41
    $region40: #{tpu_custom_call.1} parent=1 // pred_region
      %188 = dma.done [#allocation4], 16
    $region41: #{tpu_custom_call.1} parent=1 // pred_fallthru
      _
    %189 = vsyncpa [#allocation4], 1
    %190 = vsyncpa [#allocation5], 1
    %191 = vsyncpa [#allocation7], 1

</llo_original>
